<compile_context>
chip_gen: v7x
topology: tpu7x:2x2x1
jax: 0.10.0
libtpu: 0.0.40
codegen_flags: <defaults>
</compile_context>

<pallas_src>
import jax
import jax.numpy as jnp
from jax.experimental import pallas as pl
from jax.experimental.pallas import tpu as pltpu

EPSILON = 1e-07
NUM_CLASSES = 2

_LANE_COLS = 1024      # samples per row of the 2-D layout (multiple of 128)
_BLOCK_ROWS = 512      # target rows per grid step (multiple of 32)
_PAD_GAP = 1e30        # sentinel logit gap: exp() overflows -> p1 == 0 exactly


def _round_up(x, m):
    return ((x + m - 1) // m) * m


def _cdiv(a, b):
    return -(-a // b)


def _fold_to_vreg(x):
    """(R, C) f32 -> (8, 128) partial sums.

    Uses only whole-8-sublane row slices and 128-aligned lane slices, so every
    step is a full-vreg VPU add (no cross-lane / XLU work, no relayouts).
    """
    r, c = x.shape
    s = x[0:8, :]
    for k in range(1, r // 8):
        s = s + x[k * 8:(k + 1) * 8, :]
    out = s[:, 0:128]
    for j in range(1, c // 128):
        out = out + s[:, j * 128:(j + 1) * 128]
    return out


def _f1_stats_kernel(gap_ref, lbl_ref, out_ref):
    """Per-block partial statistics for the 2-class soft-F1 loss.

    gap_ref: (R, C) logit gap  x0 - x1   (f32 or bf16; math done in f32)
    lbl_ref: (R, C) int8 labels in {0, 1}; padded entries are 0
    out_ref: (1, 3, 8, 128) f32 partial sums: [tp1, sum(p1), count(label==1)]
    """
    gap = gap_ref[...].astype(jnp.float32)
    m1 = lbl_ref[...].astype(jnp.float32)        # 1.0 where label == 1, else 0.0
    # 2-class softmax == sigmoid of the logit gap.  Padded lanes carry
    # gap = +1e30 so exp() overflows to +inf and p1 is exactly 0.
    # (pl.reciprocal(..., approx=True) is a drop-in if ~1e-4 error is OK.)
    p1 = 1.0 / (1.0 + jnp.exp(gap))
    out_ref[0, 0] = _fold_to_vreg(m1 * p1)       # tp1 = sum_{label==1} p1
    out_ref[0, 1] = _fold_to_vreg(p1)            # sp1 = sum p1 (valid lanes only)
    out_ref[0, 2] = _fold_to_vreg(m1)            # c1  = #{label == 1}


def f1_loss(y_pred, y_true, *, epsilon=EPSILON):
    """Pallas equivalent of F1_Loss.forward(y_pred, y_true).

    y_pred: (N, 2) logits, f32 or bf16.   y_true: (N,) integer labels in {0,1}.
    """
    assert y_pred.ndim == 2
    assert y_true.ndim == 1
    n, c = y_pred.shape
    assert c == NUM_CLASSES
    assert y_true.shape[0] == n

    # ---- wrapper-side prep: one fused elementwise pass over y_pred --------
    gap = y_pred[:, 0] - y_pred[:, 1]            # keeps caller dtype (f32/bf16)
    lbl = y_true.astype(jnp.int8)

    # ---- sublane/lane-dense 2-D layout with sentinel padding --------------
    cols = min(_LANE_COLS, _round_up(n, 128))
    rows_needed = _cdiv(n, cols)
    grid = _cdiv(rows_needed, _BLOCK_ROWS)
    block_rows = _round_up(_cdiv(rows_needed, grid), 32)   # 32: int8 tiling
    rows = grid * block_rows
    total = rows * cols
    if total != n:
        gap = jnp.pad(gap, (0, total - n), constant_values=_PAD_GAP)
        lbl = jnp.pad(lbl, (0, total - n))                 # label 0 -> m1 == 0
    gap2 = gap.reshape(rows, cols)
    lbl2 = lbl.reshape(rows, cols)

    parts = pl.pallas_call(
        _f1_stats_kernel,
        out_shape=jax.ShapeDtypeStruct((grid, 3, 8, 128), jnp.float32),
        grid=(grid,),
        in_specs=[
            pl.BlockSpec((block_rows, cols), lambda i: (i, 0)),
            pl.BlockSpec((block_rows, cols), lambda i: (i, 0)),
        ],
        out_specs=pl.BlockSpec((1, 3, 8, 128), lambda i: (i, 0, 0, 0)),
        compiler_params=pltpu.CompilerParams(
            dimension_semantics=("parallel",),    # megacore-shardable on v7x
            vmem_limit_bytes=32 * 1024 * 1024,
        ),
    )(gap2, lbl2)

    # ---- finalize: ~20 scalar flops in the wrapper -------------------------
    stats = jnp.sum(parts, axis=(0, 2, 3))
    tp1, sp1, c1 = stats[0], stats[1], stats[2]
    n_f = jnp.float32(n)
    c0 = n_f - c1                  # #{label == 0}          (valid lanes only)
    sp0 = n_f - sp1                # sum p0 over valid lanes (p0 + p1 == 1)
    fp1 = sp1 - tp1
    tp0 = c0 - fp1                 # sum_{label==0} (1 - p1)
    fp0 = sp0 - tp0
    fn1 = c1 - tp1
    fn0 = c0 - tp0

    def _f1(tp, fp, fn):
        precision = tp / (tp + fp + epsilon)
        recall = tp / (tp + fn + epsilon)
        f1 = 2.0 * (precision * recall) / (precision + recall + epsilon)
        return jnp.clip(f1, epsilon, 1.0 - epsilon)

    return 1.0 - 0.5 * (_f1(tp0, fp0, fn0) + _f1(tp1, fp1, fn1))


def _f1_loss_ref(y_pred, y_true, epsilon=EPSILON):
    """Pure-JAX reference matching the PyTorch module."""
    y_true_oh = jax.nn.one_hot(y_true, NUM_CLASSES, dtype=jnp.float32)
    p = jax.nn.softmax(y_pred.astype(jnp.float32), axis=1)
    tp = jnp.sum(y_true_oh * p, axis=0)
    fp = jnp.sum((1.0 - y_true_oh) * p, axis=0)
    fn = jnp.sum(y_true_oh * (1.0 - p), axis=0)
    precision = tp / (tp + fp + epsilon)
    recall = tp / (tp + fn + epsilon)
    f1 = 2.0 * (precision * recall) / (precision + recall + epsilon)
    f1 = jnp.clip(f1, epsilon, 1.0 - epsilon)
    return 1.0 - jnp.mean(f1)


if __name__ == "__main__":
    key = jax.random.PRNGKey(0)

    # Case 1: tiny N, not a multiple of 128 -> exercises the padding path.
    k1, k2, k3, k4 = jax.random.split(key, 4)
    n_a = 16
    y_pred_a = jax.random.normal(k1, (n_a, NUM_CLASSES), dtype=jnp.float32)
    y_true_a = jax.random.randint(k2, (n_a,), 0, NUM_CLASSES, dtype=jnp.int32)
    loss_a = f1_loss(y_pred_a, y_true_a)
    jax.block_until_ready(loss_a)
    ref_a = _f1_loss_ref(y_pred_a, y_true_a)
    assert jnp.allclose(loss_a, ref_a, atol=1e-5, rtol=1e-5), (loss_a, ref_a)

    # Case 2: slightly larger N -> exercises multi-lane-group folding.
    n_b = 300
    y_pred_b = 3.0 * jax.random.normal(k3, (n_b, NUM_CLASSES), dtype=jnp.float32)
    y_true_b = jax.random.randint(k4, (n_b,), 0, NUM_CLASSES, dtype=jnp.int32)
    loss_b = f1_loss(y_pred_b, y_true_b)
    jax.block_until_ready(loss_b)
    ref_b = _f1_loss_ref(y_pred_b, y_true_b)
    assert jnp.allclose(loss_b, ref_b, atol=1e-5, rtol=1e-5), (loss_b, ref_b)

    print("KERNEL_OK")
</pallas_src>

<mosaic_0001>
module attributes {stable_mosaic.version = 11 : i64} {
  func.func @_f1_stats_kernel(%arg0: i32, %arg1: memref<32x128xf32, #tpu.memory_space<vmem>>, %arg2: memref<32x128xi8, #tpu.memory_space<vmem>>, %arg3: memref<1x3x8x128xf32, #tpu.memory_space<vmem>>) attributes {dimension_semantics = [#tpu.dimension_semantics<parallel>], iteration_bounds = array<i64: 1>, scalar_prefetch = 0 : i64, scratch_operands = 0 : i64, tpu.core_type = #tpu.core_type<tc>, window_params = [{transform_indices = @transform_0, window_bounds = array<i64: 32, 128>}, {transform_indices = @transform_1, window_bounds = array<i64: 32, 128>}, {transform_indices = @transform_2, window_bounds = array<i64: 1, 3, 8, 128>}]} {
    %c0 = arith.constant 0 : index
    %c0_0 = arith.constant 0 : index
    %0 = vector.load %arg1[%c0, %c0_0] : memref<32x128xf32, #tpu.memory_space<vmem>>, vector<32x128xf32>
    %c0_1 = arith.constant 0 : index
    %c0_2 = arith.constant 0 : index
    %1 = vector.load %arg2[%c0_1, %c0_2] : memref<32x128xi8, #tpu.memory_space<vmem>>, vector<32x128xi8>
    %2 = arith.sitofp %1 : vector<32x128xi8> to vector<32x128xf32>
    %3 = math.exp %0 : vector<32x128xf32>
    %cst = arith.constant 1.000000e+00 : f32
    %4 = vector.broadcast %cst : f32 to vector<32x128xf32>
    %5 = arith.addf %4, %3 : vector<32x128xf32>
    %cst_3 = arith.constant 1.000000e+00 : f32
    %6 = vector.broadcast %cst_3 : f32 to vector<32x128xf32>
    %7 = arith.divf %6, %5 : vector<32x128xf32>
    %8 = arith.mulf %2, %7 : vector<32x128xf32>
    %9 = vector.extract_strided_slice %8 {offsets = [0, 0], sizes = [8, 128], strides = [1, 1]} : vector<32x128xf32> to vector<8x128xf32>
    %10 = vector.extract_strided_slice %8 {offsets = [8, 0], sizes = [8, 128], strides = [1, 1]} : vector<32x128xf32> to vector<8x128xf32>
    %11 = arith.addf %9, %10 : vector<8x128xf32>
    %12 = vector.extract_strided_slice %8 {offsets = [16, 0], sizes = [8, 128], strides = [1, 1]} : vector<32x128xf32> to vector<8x128xf32>
    %13 = arith.addf %11, %12 : vector<8x128xf32>
    %14 = vector.extract_strided_slice %8 {offsets = [24, 0], sizes = [8, 128], strides = [1, 1]} : vector<32x128xf32> to vector<8x128xf32>
    %15 = arith.addf %13, %14 : vector<8x128xf32>
    %c0_4 = arith.constant 0 : index
    %c0_5 = arith.constant 0 : index
    %c0_6 = arith.constant 0 : index
    %c0_7 = arith.constant 0 : index
    %16 = vector.load %arg3[%c0_4, %c0_5, %c0_6, %c0_7] : memref<1x3x8x128xf32, #tpu.memory_space<vmem>>, vector<1x1x8x128xf32>
    %17 = vector.shape_cast %16 : vector<1x1x8x128xf32> to vector<8x128xf32>
    %18 = vector.shape_cast %15 : vector<8x128xf32> to vector<1x1x8x128xf32>
    tpu.vector_store %arg3[%c0_4, %c0_5, %c0_6, %c0_7], %18 {strides = array<i32>} : memref<1x3x8x128xf32, #tpu.memory_space<vmem>>, vector<1x1x8x128xf32>,
    %19 = vector.extract_strided_slice %7 {offsets = [0, 0], sizes = [8, 128], strides = [1, 1]} : vector<32x128xf32> to vector<8x128xf32>
    %20 = vector.extract_strided_slice %7 {offsets = [8, 0], sizes = [8, 128], strides = [1, 1]} : vector<32x128xf32> to vector<8x128xf32>
    %21 = arith.addf %19, %20 : vector<8x128xf32>
    %22 = vector.extract_strided_slice %7 {offsets = [16, 0], sizes = [8, 128], strides = [1, 1]} : vector<32x128xf32> to vector<8x128xf32>
    %23 = arith.addf %21, %22 : vector<8x128xf32>
    %24 = vector.extract_strided_slice %7 {offsets = [24, 0], sizes = [8, 128], strides = [1, 1]} : vector<32x128xf32> to vector<8x128xf32>
    %25 = arith.addf %23, %24 : vector<8x128xf32>
    %c0_8 = arith.constant 0 : index
    %c1 = arith.constant 1 : index
    %c0_9 = arith.constant 0 : index
    %c0_10 = arith.constant 0 : index
    %26 = vector.load %arg3[%c0_8, %c1, %c0_9, %c0_10] : memref<1x3x8x128xf32, #tpu.memory_space<vmem>>, vector<1x1x8x128xf32>
    %27 = vector.shape_cast %26 : vector<1x1x8x128xf32> to vector<8x128xf32>
    %28 = vector.shape_cast %25 : vector<8x128xf32> to vector<1x1x8x128xf32>
    tpu.vector_store %arg3[%c0_8, %c1, %c0_9, %c0_10], %28 {strides = array<i32>} : memref<1x3x8x128xf32, #tpu.memory_space<vmem>>, vector<1x1x8x128xf32>,
    %29 = vector.extract_strided_slice %2 {offsets = [0, 0], sizes = [8, 128], strides = [1, 1]} : vector<32x128xf32> to vector<8x128xf32>
    %30 = vector.extract_strided_slice %2 {offsets = [8, 0], sizes = [8, 128], strides = [1, 1]} : vector<32x128xf32> to vector<8x128xf32>
    %31 = arith.addf %29, %30 : vector<8x128xf32>
    %32 = vector.extract_strided_slice %2 {offsets = [16, 0], sizes = [8, 128], strides = [1, 1]} : vector<32x128xf32> to vector<8x128xf32>
    %33 = arith.addf %31, %32 : vector<8x128xf32>
    %34 = vector.extract_strided_slice %2 {offsets = [24, 0], sizes = [8, 128], strides = [1, 1]} : vector<32x128xf32> to vector<8x128xf32>
    %35 = arith.addf %33, %34 : vector<8x128xf32>
    %c0_11 = arith.constant 0 : index
    %c2 = arith.constant 2 : index
    %c0_12 = arith.constant 0 : index
    %c0_13 = arith.constant 0 : index
    %36 = vector.load %arg3[%c0_11, %c2, %c0_12, %c0_13] : memref<1x3x8x128xf32, #tpu.memory_space<vmem>>, vector<1x1x8x128xf32>
    %37 = vector.shape_cast %36 : vector<1x1x8x128xf32> to vector<8x128xf32>
    %38 = vector.shape_cast %35 : vector<8x128xf32> to vector<1x1x8x128xf32>
    tpu.vector_store %arg3[%c0_11, %c2, %c0_12, %c0_13], %38 {strides = array<i32>} : memref<1x3x8x128xf32, #tpu.memory_space<vmem>>, vector<1x1x8x128xf32>,
    return
  }
  func.func @transform_0(%arg0: i32) -> (i32, i32) {
    %c0_i32 = arith.constant 0 : i32
    %c0_i32_0 = arith.constant 0 : i32
    return %arg0, %c0_i32 : i32, i32
  }
  func.func @transform_1(%arg0: i32) -> (i32, i32) {
    %c0_i32 = arith.constant 0 : i32
    %c0_i32_0 = arith.constant 0 : i32
    return %arg0, %c0_i32 : i32, i32
  }
  func.func @transform_2(%arg0: i32) -> (i32, i32, i32, i32) {
    %c0_i32 = arith.constant 0 : i32
    %c0_i32_0 = arith.constant 0 : i32
    %c0_i32_1 = arith.constant 0 : i32
    %c0_i32_2 = arith.constant 0 : i32
    return %arg0, %c0_i32, %c0_i32_0, %c0_i32_1 : i32, i32, i32, i32
  }
}

</mosaic_0001>

<llo_original>
// kernel: tpu_custom_call.1
$region0: #{tpu_custom_call.1}
  #allocation0 [shape = 'u32[]', space=smem, size = 0x4, offset = 0x4, fixed_abs, tag = 'smem constant byte address 0x4 - core index']
  #allocation1 [shape = 'u32[144,128]{1,0:T(1,128)}', space=vmem, size = 0x12000, scoped, tag = 'internal scratch']
  %s0 = inlined_call_operand.hbm [shape: f32[32,128], index: 0, kind: input, shape index: {}]
  %s1 = inlined_call_operand.hbm [shape: s8[32,128], index: 1, kind: input, shape index: {}]
  %s2 = inlined_call_operand.hbm [shape: f32[1,3,8,128], index: 2, kind: output, shape index: {}]
  %s3 = sld [smem:[#allocation0]]
  $region26: #{tpu_custom_call.1} parent=0
    _
  %s5 = ssub.s32 1, %s3
  %s6 = scalar_select 0, %s5, %s3
  $region1: #{tpu_custom_call.1} parent=0
    #allocation2 [shape = 'u8[16384]{0}', space=vmem, size = 0x4000, scoped, tag = 'input window, operand 0, single buffered']
    #allocation3 [shape = 's32[1]{0}', space=sflag, size = 0x4, scoped, tag = 'scoped memory for tpu_custom_call.1']
    #allocation4 [shape = 's32[1]{0}', space=sflag, size = 0x4, scoped, tag = 'scoped memory for tpu_custom_call.1']
    #allocation5 [shape = 'u8[4096]{0}', space=vmem, size = 0x1000, scoped, tag = 'input window, operand 1, single buffered']
    #allocation6 [shape = 's32[1]{0}', space=sflag, size = 0x4, scoped, tag = 'scoped memory for tpu_custom_call.1']
    #allocation7 [shape = 'u8[12288]{0}', space=vmem, size = 0x3000, scoped, tag = 'output window, operand 0, single buffered']
    %7 = vsyncpa [#allocation3], 0
    %8 = vsyncpa [#allocation6], 0
    %9 = vsyncpa [#allocation4], 0
    // Predicated region
    $region2: #{tpu_custom_call.1} parent=1 // pred_check
      _
    $region3: #{tpu_custom_call.1} parent=1 // pred_check_branch
      %11 = sbr.rel (0) target = $region5
    $region4: #{tpu_custom_call.1} parent=1 // pred_region
      %s13 = ssub.s32 512, 512
      %14 = vsyncadd [#allocation3], %s13
      %s15 = sshll.u32 [#allocation2], 4
      %s16 = int_to_ptr.vmem [resolvable:$true] %s15
      %21 = dma.hbm_to_vmem [thread:$0]  %s0, 512, %s16, [#allocation3], 128, 128, 8
    $region5: #{tpu_custom_call.1} parent=1 // pred_fallthru
      _
    // Predicated region
    $region6: #{tpu_custom_call.1} parent=1 // pred_check
      _
    $region7: #{tpu_custom_call.1} parent=1 // pred_check_branch
      %23 = sbr.rel (0) target = $region9
    $region8: #{tpu_custom_call.1} parent=1 // pred_region
      %s25 = ssub.s32 128, 128
      %26 = vsyncadd [#allocation6], %s25
      %s28 = sshll.u32 [#allocation5], 4
      %s29 = int_to_ptr.vmem [resolvable:$true] %s28
      %31 = dma.hbm_to_vmem [thread:$0]  %s1, 128, %s29, [#allocation6]
    $region9: #{tpu_custom_call.1} parent=1 // pred_fallthru
      _
    // Predicated region
    $region10: #{tpu_custom_call.1} parent=1 // pred_check
      _
    $region11: #{tpu_custom_call.1} parent=1 // pred_check_branch
      %33 = sbr.rel (0) target = $region13
    $region12: #{tpu_custom_call.1} parent=1 // pred_region
      %34 = dma.done [#allocation3], 512
    $region13: #{tpu_custom_call.1} parent=1 // pred_fallthru
      _
    // Predicated region
    $region14: #{tpu_custom_call.1} parent=1 // pred_check
      _
    $region15: #{tpu_custom_call.1} parent=1 // pred_check_branch
      %36 = sbr.rel (0) target = $region17
    $region16: #{tpu_custom_call.1} parent=1 // pred_region
      %37 = dma.done [#allocation6], 128
    $region17: #{tpu_custom_call.1} parent=1 // pred_fallthru
      _
    %v38 = vld [vmem:[#allocation2] sm:$0xff]
    %v39 = vld [vmem:[#allocation2 + $0x8] sm:$0xff]
    %v40 = vld [vmem:[#allocation2 + $0x10] sm:$0xff]
    %v41 = vld [vmem:[#allocation2 + $0x18] sm:$0xff]
    %v42 = vld [vmem:[#allocation5] sm:$0xff]
    %v43 = vunpack.c.0.s8 %v42
    %v44 = vunpack.c.1.s8 %v42
    %v45 = vunpack.c.2.s8 %v42
    %v46 = vunpack.c.3.s8 %v42
    %v47 = vcvt.s32.f32 %v43
    %v48 = vcvt.s32.f32 %v44
    %v49 = vcvt.s32.f32 %v45
    %v50 = vcvt.s32.f32 %v46
    %v51 = vmul.f32 %v38, 1.442695
    %v52 = vpow.pop %v51
    %v53 = vmul.f32 %v39, 1.442695
    %v54 = vpow.pop %v53
    %v55 = vmul.f32 %v40, 1.442695
    %v56 = vpow.pop %v55
    %v57 = vmul.f32 %v41, 1.442695
    %v58 = vpow.pop %v57
    %v59 = vadd.f32 %v52, 1.0
    %v60 = vadd.f32 %v54, 1.0
    %v61 = vadd.f32 %v56, 1.0
    %v62 = vadd.f32 %v58, 1.0
    %v63 = vrcp.pop %v59
    %v64 = vmul.f32 1.0, %v63
    %v65 = vrcp.pop %v60
    %v66 = vmul.f32 1.0, %v65
    %v67 = vrcp.pop %v61
    %v68 = vmul.f32 1.0, %v67
    %v69 = vrcp.pop %v62
    %v70 = vmul.f32 1.0, %v69
    %v71 = vmul.f32 %v47, %v64
    %v72 = vmul.f32 %v48, %v66
    %v73 = vmul.f32 %v49, %v68
    %v74 = vmul.f32 %v50, %v70
    %v75 = vadd.f32 %v71, %v72
    %v76 = vadd.f32 %v75, %v73
    %v77 = vadd.f32 %v76, %v74
    %78 = vst [vmem:[#allocation7] sm:$0xff] %v77
    %v79 = vadd.f32 %v64, %v66
    %v80 = vadd.f32 %v79, %v68
    %v81 = vadd.f32 %v80, %v70
    %s82 = scalar_lea.vmem [#allocation7], 8
    %83 = vst [vmem:[%s82] sm:$0xff] %v81
    %v84 = vadd.f32 %v47, %v48
    %v85 = vadd.f32 %v84, %v49
    %v86 = vadd.f32 %v85, %v50
    %s87 = scalar_lea.vmem [#allocation7], 16
    %88 = vst [vmem:[%s87] sm:$0xff] %v86
    // Predicated region
    $region18: #{tpu_custom_call.1} parent=1 // pred_check
      _
    $region19: #{tpu_custom_call.1} parent=1 // pred_check_branch
      %90 = sbr.rel (0) target = $region21
    $region20: #{tpu_custom_call.1} parent=1 // pred_region
      %s92 = ssub.s32 384, 384
      %93 = vsyncadd [#allocation4], %s92
      %s94 = sshll.u32 [#allocation7], 4
      %s95 = int_to_ptr.vmem [resolvable:$true] %s94
      %100 = dma.vmem_to_hbm [thread:$0]  %s95, 384, %s2, [#allocation4], 128, 128, 8
    $region21: #{tpu_custom_call.1} parent=1 // pred_fallthru
      _
    // Predicated region
    $region22: #{tpu_custom_call.1} parent=1 // pred_check
      _
    $region23: #{tpu_custom_call.1} parent=1 // pred_check_branch
      %102 = sbr.rel (0) target = $region25
    $region24: #{tpu_custom_call.1} parent=1 // pred_region
      %103 = dma.done [#allocation4], 384
    $region25: #{tpu_custom_call.1} parent=1 // pred_fallthru
      _
    %104 = vsyncpa [#allocation3], 1
    %105 = vsyncpa [#allocation6], 1
    %106 = vsyncpa [#allocation4], 1

</llo_original>
